<compile_context>
chip_gen: v7x
topology: tpu7x:2x2x1
jax: 0.10.0
libtpu: 0.0.40
codegen_flags: <defaults>
</compile_context>

<pallas_src>
import math

import jax
import jax.numpy as jnp
from jax import lax
from jax.experimental import pallas as pl
from jax.experimental.pallas import tpu as pltpu

_LANE = 128
_SMEM_SPEC = pl.BlockSpec(memory_space=pltpu.MemorySpace.SMEM)
_VMEM_SPEC = pl.BlockSpec(memory_space=pltpu.MemorySpace.VMEM)   # full-array, resident

_VMEM_LIMIT_CACHE = None


def _vmem_limit_bytes():
    """Requested scoped-VMEM limit, derived from the chip's physical VMEM.

    ~96 MiB on 128-MiB parts (v5e/v6e), ~48 MiB on 64-MiB parts (v7x)."""
    global _VMEM_LIMIT_CACHE
    if _VMEM_LIMIT_CACHE is None:
        cap = None
        try:
            info = pltpu.get_tpu_info()
            for name in ("vmem_capacity_bytes", "vmem_bytes", "vmem_size_bytes"):
                cap = getattr(info, name, None)
                if cap:
                    break
        except Exception:
            cap = None
        if not cap:
            cap = 64 * 1024 * 1024          # conservative (v7x per-core VMEM)
        limit = int(cap) * 3 // 4
        _VMEM_LIMIT_CACHE = max(32 * 1024 * 1024, min(limit, 100 * 1024 * 1024))
    return _VMEM_LIMIT_CACHE


def _fit_tile(n, align, max_tile, stream_bytes_per_row, resident_bytes, vmem_limit):
    """Largest tile (multiple of `align`, divisor of n, <= max_tile) whose
    double-buffered streamed blocks fit next to the resident operands in ~80%
    of the VMEM limit.  `stream_bytes_per_row` must already include the x2
    double-buffer factor."""
    budget = int(vmem_limit * 0.8) - resident_bytes
    cap = budget // max(stream_bytes_per_row, 1)
    cap = min(cap, max_tile, n)
    if cap < align or n % align != 0:
        # TODO(synk): very large n that is not a multiple of `align` would need
        # masked edge tiles; fall back to a single full-extent block.
        return n
    t = (cap // align) * align
    while t >= align:
        if n % t == 0:
            return t
        t -= align
    return n


def _pad_features(x):
    """Zero-pad the feature axis to a multiple of 128 lanes.

    Correctness-neutral for pairwise distances, the RBF Gram, grad_K1_avg and
    the entropy surrogate (padded columns contribute exactly zero)."""
    n, d = x.shape
    dp = ((d + _LANE - 1) // _LANE) * _LANE
    if dp == d:
        return x
    return jnp.pad(x, ((0, 0), (0, dp - d)))


# ----------------------------------------------------------------------------
# Kernel 1: pairwise squared distances  d2[i, j] = ||x_i - x_j||^2
# Row-tiled; only used for the median-heuristic bandwidth pick.  sq_f is
# hoisted to the wrapper as a lane-aligned (1, N) row; x is resident (1-buf).
# ----------------------------------------------------------------------------
def _sqdist_kernel(sqf_ref, xt_ref, xf_ref, d2_ref):
    xt = xt_ref[...]                                            # (tm, Dp) row tile
    xf = xf_ref[...]                                            # (N,  Dp) resident
    sq_t = jnp.sum(xt * xt, axis=-1, keepdims=True)             # (tm, 1)
    gram = lax.dot_general(xt, xf, (((1,), (1,)), ((), ())),
                           preferred_element_type=jnp.float32)  # (tm, N)  f32 (parity)
    d2_ref[...] = jnp.maximum(sq_t + sqf_ref[...] - 2.0 * gram, 0.0)


def pairwise_sqdist(x, sq_row, vmem_limit):
    n, dp = x.shape
    resident = n * dp * 4 + n * 4                    # x (f32) + sq row
    stream = 2 * (n * 4 + dp * 4)                    # d2-out row + xt row, double-buffered
    tm = _fit_tile(n, 8, 512, stream, resident, vmem_limit)
    return pl.pallas_call(
        _sqdist_kernel,
        out_shape=jax.ShapeDtypeStruct((n, n), jnp.float32),
        grid=(n // tm,),
        in_specs=[_VMEM_SPEC,                                   # sq row (resident)
                  pl.BlockSpec((tm, dp), lambda i: (i, 0)),
                  _VMEM_SPEC],                                  # x (resident)
        out_specs=pl.BlockSpec((tm, n), lambda i: (i, 0)),
        compiler_params=pltpu.CompilerParams(
            dimension_semantics=("parallel",),
            vmem_limit_bytes=vmem_limit),
    )(sq_row, x, x)


# ----------------------------------------------------------------------------
# Kernel 2: RBF Gram K = exp(-d2 / (2 w^2)) and grad_K1_avg
#   grad_K1_avg[j, d] = mean_i ( -K[i, j] * (x_i[d] - x_j[d]) / w^2 )
#                     = (rowsum_j * x_j[d] - (K x)[j, d]) / (w^2 N)   (K symmetric)
# d2 is recomputed from x in-kernel (f32 for bandwidth/K parity); the K@x
# matmul runs bf16-in / f32-acc against a resident bf16 copy of x.
# ----------------------------------------------------------------------------
def _gram_kernel(w_ref, sqf_ref, xt_ref, xf_ref, xfb_ref, k_ref, g1_ref):
    w = w_ref[0, 0]
    xt = xt_ref[...]                                            # (tm, Dp) f32
    xf = xf_ref[...]                                            # (N,  Dp) f32 resident
    n = jnp.float32(xf.shape[0])

    sq_t = jnp.sum(xt * xt, axis=-1, keepdims=True)
    gram = lax.dot_general(xt, xf, (((1,), (1,)), ((), ())),
                           preferred_element_type=jnp.float32)  # (tm, N) f32
    d2 = jnp.maximum(sq_t + sqf_ref[...] - 2.0 * gram, 0.0)

    K = jnp.exp(d2 * (-1.0 / (2.0 * w * w)))                    # f32 (feeds eigh)
    k_ref[...] = K

    rowsum = jnp.sum(K, axis=1, keepdims=True)                  # (tm, 1) f32
    kx = jnp.dot(K.astype(jnp.bfloat16), xfb_ref[...],
                 preferred_element_type=jnp.float32)            # bf16 MXU, f32 acc
    g1_ref[...] = (rowsum * xt - kx) * (1.0 / (w * w * n))


def gram_and_gradavg(x, sq_row, width, vmem_limit):
    n, dp = x.shape
    x_b16 = x.astype(jnp.bfloat16)
    w = jnp.reshape(width.astype(jnp.float32), (1, 1))
    resident = n * dp * 4 + n * dp * 2 + n * 4       # x f32 + x bf16 + sq row
    stream = 2 * (n * 4 + dp * 4 + dp * 4)           # K row + xt row + g1 row, x2 buffers
    tm = _fit_tile(n, 8, 512, stream, resident, vmem_limit)
    return pl.pallas_call(
        _gram_kernel,
        out_shape=(jax.ShapeDtypeStruct((n, n), jnp.float32),
                   jax.ShapeDtypeStruct((n, dp), jnp.float32)),
        grid=(n // tm,),
        in_specs=[_SMEM_SPEC,                                   # width scalar
                  _VMEM_SPEC,                                   # sq row (resident)
                  pl.BlockSpec((tm, dp), lambda i: (i, 0)),
                  _VMEM_SPEC,                                   # x f32 (resident)
                  _VMEM_SPEC],                                  # x bf16 (resident)
        out_specs=(pl.BlockSpec((tm, n), lambda i: (i, 0)),
                   pl.BlockSpec((tm, dp), lambda i: (i, 0))),
        compiler_params=pltpu.CompilerParams(
            dimension_semantics=("parallel",),
            vmem_limit_bytes=vmem_limit),
    )(w, sq_row, x, x, x_b16)


# ----------------------------------------------------------------------------
# Kernel 3: entropy surrogate in trace form, tiled over the eigen index.
# With n_eigen=None (all eigenpairs), eigen_ext == sqrt(M) V exactly, so
#   surrogate = -sum_k (1/lam_k) <(V^T S)[k,:], (V^T G1)[k,:]>
# V is pre-transposed in the wrapper (standard MXU feed); the 1/lam fold and
# the sublane reduction are one (1,kb)x(kb,Dp) matmul; the (1,1,Dp) output is a
# resident VMEM accumulator (final lane sum done in the wrapper).  A leading
# "parallel" grid axis splits the eigen blocks over v7x's two TensorCores.
# ----------------------------------------------------------------------------
def _surrogate_kernel(invlam_ref, vt_ref, s_ref, g1_ref, acc_ref):
    j = pl.program_id(1)

    @pl.when(j == 0)
    def _():
        acc_ref[...] = jnp.zeros_like(acc_ref)

    vt = vt_ref[...]                                            # (kb, N) bf16
    a = jnp.dot(vt, s_ref[...], preferred_element_type=jnp.float32)   # (kb, Dp)
    b = jnp.dot(vt, g1_ref[...], preferred_element_type=jnp.float32)  # (kb, Dp)
    part = lax.dot_general(invlam_ref[...], a * b, (((1,), (0,)), ((), ())),
                           preferred_element_type=jnp.float32)  # (1, Dp)
    acc_ref[...] += part[None]


def surrogate_from_eig(inv_lam_row, vt_b16, s_b16, g1_b16, vmem_limit):
    n = vt_b16.shape[0]
    dp = s_b16.shape[1]
    resident = 2 * n * dp * 2 + n * 4                # S + G1 (bf16) + inv_lam row
    stream = 2 * (n * 2 + 4)                         # Vt row (bf16) + inv_lam, x2 buffers
    kb = _fit_tile(n, _LANE, 1024, stream, resident, vmem_limit)
    nblocks = n // kb
    p = 2 if (nblocks >= 2 and nblocks % 2 == 0) else 1
    jblocks = nblocks // p

    acc = pl.pallas_call(
        _surrogate_kernel,
        out_shape=jax.ShapeDtypeStruct((p, 1, dp), jnp.float32),
        grid=(p, jblocks),
        in_specs=[pl.BlockSpec((1, kb), lambda pi, j: (0, pi * jblocks + j)),
                  pl.BlockSpec((kb, n), lambda pi, j: (pi * jblocks + j, 0)),
                  _VMEM_SPEC,                                   # samples bf16 (resident)
                  _VMEM_SPEC],                                  # grad_K1_avg bf16 (resident)
        out_specs=pl.BlockSpec((1, 1, dp), lambda pi, j: (pi, 0, 0)),
        compiler_params=pltpu.CompilerParams(
            dimension_semantics=("parallel", "arbitrary"),
            vmem_limit_bytes=vmem_limit),
    )(inv_lam_row, vt_b16, s_b16, g1_b16)
    return -jnp.sum(acc)


# ----------------------------------------------------------------------------
# fit_loss: tiny (N, D_out) MSE — plain jnp (a pallas_call here is pure launch
# overhead at this size, per perf review).
# ----------------------------------------------------------------------------
def mse_fit_loss(pred, target):
    diff = pred["y_pred"].astype(jnp.float32) - target["y"].astype(jnp.float32)
    val = jnp.mean(diff * diff)
    return val, {"mse": val}


# ----------------------------------------------------------------------------
# SpectralScoreEstimator / MIGE glue (n_eigen=None, n_eigen_threshold=None:
# all eigenpairs are used, exactly as the PyTorch defaults).
# ----------------------------------------------------------------------------
def entropy_surrogate(samples):
    samples = _pad_features(samples.astype(jnp.float32))
    n, dp = samples.shape
    vmem_limit = _vmem_limit_bytes()

    sq_row = jnp.sum(samples * samples, axis=-1).reshape(1, n)  # hoisted ||x_j||^2

    d2 = pairwise_sqdist(samples, sq_row, vmem_limit)           # Pallas

    # median-heuristic bandwidth: k-th largest pairwise distance == sqrt of the
    # k-th largest squared distance (monotone).  Value-only ascending sort +
    # single scalar read (no top_k values+indices materialisation).
    # NOTE: like the reference, width == 0 (duplicate samples) yields inf/NaN.
    # TODO(synk): fuse an exact histogram order-statistic into kernel 1 so d2
    # never needs an HBM round-trip.
    k = n * n // 2
    width = lax.stop_gradient(jnp.sqrt(jnp.sort(d2.reshape(-1))[n * n - k]))

    K, g1 = gram_and_gradavg(samples, sq_row, width, vmem_limit)  # Pallas

    # TODO(synk): symmetric eigendecomposition (torch.symeig) has no Pallas
    # primitive; done in plain JAX.  NOTE: like the PyTorch reference, tiny
    # eigenvalues of the PSD Gram make 1/lam ill-conditioned.
    lam, V = jnp.linalg.eigh(K)                                 # ascending, like torch.symeig
    inv_lam_row = (1.0 / lam).reshape(1, n).astype(jnp.float32)
    vt_b16 = V.T.astype(jnp.bfloat16)                           # standard MXU feed

    return surrogate_from_eig(inv_lam_row, vt_b16,
                              samples.astype(jnp.bfloat16),
                              g1.astype(jnp.bfloat16),
                              vmem_limit)                        # Pallas


def mutual_information(x, y):
    joint = entropy_surrogate(jnp.concatenate([x, y], axis=-1))
    marginal = entropy_surrogate(y)
    return joint - marginal


class WeightScheduler:
    """Constant-weight stand-in for the WeightScheduler dependency."""

    @property
    def weight(self):
        return 0.1


def information_bottleneck_loss(pred, target, reg_weight):
    pred = dict(pred)
    bottleneck = pred.pop("bottleneck")
    event_encoding = pred.pop("event_encoding")

    fit_loss, losses_dict = mse_fit_loss(pred, target)
    latent_loss = mutual_information(event_encoding, bottleneck)
    loss = fit_loss + reg_weight * latent_loss

    losses_dict["model_fit"] = fit_loss
    losses_dict["total"] = loss
    losses_dict["mutual_information"] = latent_loss
    losses_dict = {f"loss/{name}": v for name, v in losses_dict.items()}
    return loss, {k: lax.stop_gradient(v) for k, v in losses_dict.items()}


if __name__ == "__main__":
    key = jax.random.PRNGKey(0)
    k1, k2, k3, k4 = jax.random.split(key, 4)

    N = 16          # number of samples (batch)
    D_ENC = 16      # event_encoding dim
    D_BOT = 8       # bottleneck dim
    D_OUT = 4       # prediction dim used by fit_loss

    pred = {
        "event_encoding": jax.random.normal(k1, (N, D_ENC), jnp.float32),
        "bottleneck": jax.random.normal(k2, (N, D_BOT), jnp.float32),
        "y_pred": jax.random.normal(k3, (N, D_OUT), jnp.float32),
    }
    target = {"y": jax.random.normal(k4, (N, D_OUT), jnp.float32)}

    scheduler = WeightScheduler()
    loss, losses = information_bottleneck_loss(pred, target, scheduler.weight)
    loss = jax.block_until_ready(loss)

    lf = float(loss)
    assert math.isfinite(lf), "Loss not finite!"
    total = sum(float(v) for v in losses.values())
    assert math.isfinite(total), "Loss not finite!"

    print("KERNEL_OK")
</pallas_src>

<mosaic_0001>
module attributes {stable_mosaic.version = 11 : i64} {
  func.func @_sqdist_kernel(%arg0: i32, %arg1: memref<1x16xf32, #tpu.memory_space<vmem>>, %arg2: memref<16x128xf32, #tpu.memory_space<vmem>>, %arg3: memref<16x128xf32, #tpu.memory_space<vmem>>, %arg4: memref<16x16xf32, #tpu.memory_space<vmem>>) attributes {dimension_semantics = [#tpu.dimension_semantics<parallel>], iteration_bounds = array<i64: 1>, scalar_prefetch = 0 : i64, scratch_operands = 0 : i64, tpu.core_type = #tpu.core_type<tc>, window_params = [{pipeline_mode = #tpu.pipeline_mode<synchronous>, transform_indices = @transform_0, window_bounds = array<i64: 1, 16>}, {transform_indices = @transform_1, window_bounds = array<i64: 16, 128>}, {pipeline_mode = #tpu.pipeline_mode<synchronous>, transform_indices = @transform_2, window_bounds = array<i64: 16, 128>}, {transform_indices = @transform_3, window_bounds = array<i64: 16, 16>}]} {
    %c0 = arith.constant 0 : index
    %c0_0 = arith.constant 0 : index
    %0 = vector.load %arg2[%c0, %c0_0] : memref<16x128xf32, #tpu.memory_space<vmem>>, vector<16x128xf32>
    %c0_1 = arith.constant 0 : index
    %c0_2 = arith.constant 0 : index
    %1 = vector.load %arg3[%c0_1, %c0_2] : memref<16x128xf32, #tpu.memory_space<vmem>>, vector<16x128xf32>
    %2 = arith.mulf %0, %0 : vector<16x128xf32>
    %cst = arith.constant dense<0.000000e+00> : vector<16xf32>
    %3 = vector.multi_reduction <add>, %2, %cst [1] : vector<16x128xf32> to vector<16xf32>
    %4 = vector.shape_cast %3 : vector<16xf32> to vector<16x1xf32>
    %cst_3 = arith.constant dense<0.000000e+00> : vector<16x16xf32>
    %5 = tpu.matmul %0, %1, %cst_3 {dimension_numbers = #tpu.dot_dimension_numbers<[1], [1], [0], [0], [0, 0, 1, 0], [], []>} : vector<16x128xf32>, vector<16x128xf32>, vector<16x16xf32> -> vector<16x16xf32>
    %c0_4 = arith.constant 0 : index
    %c0_5 = arith.constant 0 : index
    %6 = vector.load %arg1[%c0_4, %c0_5] : memref<1x16xf32, #tpu.memory_space<vmem>>, vector<1x16xf32>
    %7 = vector.broadcast %4 : vector<16x1xf32> to vector<16x16xf32>
    %8 = vector.broadcast %6 : vector<1x16xf32> to vector<16x16xf32>
    %9 = arith.addf %7, %8 : vector<16x16xf32>
    %cst_6 = arith.constant 2.000000e+00 : f32
    %10 = vector.broadcast %cst_6 : f32 to vector<16x16xf32>
    %11 = arith.mulf %10, %5 : vector<16x16xf32>
    %12 = arith.subf %9, %11 : vector<16x16xf32>
    %cst_7 = arith.constant 0.000000e+00 : f32
    %13 = vector.broadcast %cst_7 : f32 to vector<16x16xf32>
    %14 = arith.maximumf %12, %13 : vector<16x16xf32>
    %c0_8 = arith.constant 0 : index
    %c0_9 = arith.constant 0 : index
    %15 = vector.load %arg4[%c0_8, %c0_9] : memref<16x16xf32, #tpu.memory_space<vmem>>, vector<16x16xf32>
    tpu.vector_store %arg4[%c0_8, %c0_9], %14 {strides = array<i32>} : memref<16x16xf32, #tpu.memory_space<vmem>>, vector<16x16xf32>,
    return
  }
  func.func @transform_0(%arg0: i32) -> (i32, i32) {
    %c0_i32 = arith.constant 0 : i32
    %c0_i32_0 = arith.constant 0 : i32
    %c0_i32_1 = arith.constant 0 : i32
    return %c0_i32, %c0_i32_0 : i32, i32
  }
  func.func @transform_1(%arg0: i32) -> (i32, i32) {
    %c0_i32 = arith.constant 0 : i32
    %c0_i32_0 = arith.constant 0 : i32
    return %arg0, %c0_i32 : i32, i32
  }
  func.func @transform_2(%arg0: i32) -> (i32, i32) {
    %c0_i32 = arith.constant 0 : i32
    %c0_i32_0 = arith.constant 0 : i32
    %c0_i32_1 = arith.constant 0 : i32
    return %c0_i32, %c0_i32_0 : i32, i32
  }
  func.func @transform_3(%arg0: i32) -> (i32, i32) {
    %c0_i32 = arith.constant 0 : i32
    %c0_i32_0 = arith.constant 0 : i32
    return %arg0, %c0_i32 : i32, i32
  }
}

</mosaic_0001>

<llo_original>
// kernel: tpu_custom_call.1
$region0: #{tpu_custom_call.1}
  #allocation0 [shape = 'u32[]', space=smem, size = 0x4, offset = 0x4, fixed_abs, tag = 'smem constant byte address 0x4 - core index']
  #allocation1 [shape = 'u32[144,128]{1,0:T(1,128)}', space=vmem, size = 0x12000, scoped, tag = 'internal scratch']
  %s0 = inlined_call_operand.hbm [shape: f32[1,16], index: 0, kind: input, shape index: {}]
  %s1 = inlined_call_operand.hbm [shape: f32[16,128], index: 1, kind: input, shape index: {}]
  %s2 = inlined_call_operand.hbm [shape: f32[16,128], index: 2, kind: input, shape index: {}]
  %s3 = inlined_call_operand.hbm [shape: f32[16,16], index: 3, kind: output, shape index: {}]
  %s4 = sld [smem:[#allocation0]]
  $region34: #{tpu_custom_call.1} parent=0
    _
  %s6 = ssub.s32 1, %s4
  %s7 = scalar_select 0, %s6, %s4
  $region1: #{tpu_custom_call.1} parent=0
    #allocation2 [shape = 'u8[512]{0}', space=vmem, size = 0x400, scoped, tag = 'input window, operand 0, single buffered']
    #allocation3 [shape = 's32[1]{0}', space=sflag, size = 0x4, scoped, tag = 'scoped memory for tpu_custom_call.1']
    #allocation4 [shape = 's32[1]{0}', space=sflag, size = 0x4, scoped, tag = 'scoped memory for tpu_custom_call.1']
    #allocation5 [shape = 'u8[8192]{0}', space=vmem, size = 0x2000, scoped, tag = 'input window, operand 1, single buffered']
    #allocation6 [shape = 's32[1]{0}', space=sflag, size = 0x4, scoped, tag = 'scoped memory for tpu_custom_call.1']
    #allocation7 [shape = 'u8[8192]{0}', space=vmem, size = 0x2000, scoped, tag = 'input window, operand 2, single buffered']
    #allocation8 [shape = 'u8[8192]{0}', space=vmem, size = 0x2000, scoped, tag = 'output window, operand 0, single buffered']
    %8 = vsyncpa [#allocation3], 0
    %9 = vsyncpa [#allocation6], 0
    %10 = vsyncpa [#allocation4], 0
    // Predicated region
    $region2: #{tpu_custom_call.1} parent=1 // pred_check
      _
    $region3: #{tpu_custom_call.1} parent=1 // pred_check_branch
      %12 = sbr.rel (0) target = $region5
    $region4: #{tpu_custom_call.1} parent=1 // pred_region
      %s14 = ssub.s32 16, 16
      %15 = vsyncadd [#allocation3], %s14
      %s17 = sshll.u32 [#allocation2], 4
      %s18 = int_to_ptr.vmem [resolvable:$true] %s17
      %20 = dma.hbm_to_vmem [thread:$0]  %s0, 16, %s18, [#allocation3]
    $region5: #{tpu_custom_call.1} parent=1 // pred_fallthru
      _
    // Predicated region
    $region6: #{tpu_custom_call.1} parent=1 // pred_check
      _
    $region7: #{tpu_custom_call.1} parent=1 // pred_check_branch
      %22 = sbr.rel (0) target = $region9
    $region8: #{tpu_custom_call.1} parent=1 // pred_region
      %s24 = ssub.s32 256, 256
      %25 = vsyncadd [#allocation6], %s24
      %s26 = sshll.u32 [#allocation5], 4
      %s27 = int_to_ptr.vmem [resolvable:$true] %s26
      %32 = dma.hbm_to_vmem [thread:$0]  %s1, 256, %s27, [#allocation6], 128, 128, 8
    $region9: #{tpu_custom_call.1} parent=1 // pred_fallthru
      _
    // Predicated region
    $region10: #{tpu_custom_call.1} parent=1 // pred_check
      _
    $region11: #{tpu_custom_call.1} parent=1 // pred_check_branch
      %34 = sbr.rel (0) target = $region13
    $region12: #{tpu_custom_call.1} parent=1 // pred_region
      %s36 = ssub.s32 256, 256
      %37 = vsyncadd [#allocation6], %s36
      %s38 = sshll.u32 [#allocation7], 4
      %s39 = int_to_ptr.vmem [resolvable:$true] %s38
      %44 = dma.hbm_to_vmem [thread:$0]  %s2, 256, %s39, [#allocation6], 128, 128, 8
    $region13: #{tpu_custom_call.1} parent=1 // pred_fallthru
      _
    // Predicated region
    $region14: #{tpu_custom_call.1} parent=1 // pred_check
      _
    $region15: #{tpu_custom_call.1} parent=1 // pred_check_branch
      %46 = sbr.rel (0) target = $region17
    $region16: #{tpu_custom_call.1} parent=1 // pred_region
      %47 = dma.done [#allocation3], 16
    $region17: #{tpu_custom_call.1} parent=1 // pred_fallthru
      _
    // Predicated region
    $region18: #{tpu_custom_call.1} parent=1 // pred_check
      _
    $region19: #{tpu_custom_call.1} parent=1 // pred_check_branch
      %49 = sbr.rel (0) target = $region21
    $region20: #{tpu_custom_call.1} parent=1 // pred_region
      %50 = dma.done [#allocation6], 256
    $region21: #{tpu_custom_call.1} parent=1 // pred_fallthru
      _
    // Predicated region
    $region22: #{tpu_custom_call.1} parent=1 // pred_check
      _
    $region23: #{tpu_custom_call.1} parent=1 // pred_check_branch
      %52 = sbr.rel (0) target = $region25
    $region24: #{tpu_custom_call.1} parent=1 // pred_region
      %53 = dma.done [#allocation6], 256
    $region25: #{tpu_custom_call.1} parent=1 // pred_fallthru
      _
    %v54 = vld [vmem:[#allocation5] sm:$0xff]
    %v55 = vld [vmem:[#allocation5 + $0x8] sm:$0xff]
    %v56 = vld [vmem:[#allocation7] sm:$0xff]
    %v57 = vld [vmem:[#allocation7 + $0x8] sm:$0xff]
    %v58 = vmul.f32 %v54, %v54
    %v59 = vmul.f32 %v55, %v55
    %60 = vadd.xlane.f32.xlu0 %v58
    %v61 = vpop.xlane.xlu0 %60
    %62 = vadd.xlane.f32.xlu0 %v59
    %v63 = vpop.xlane.xlu0 %62
    %64 = vmatprep.subr.mxu0 0.0
    %65 = vmatpush1.xpose.msra.mxu0 %v56
    %66 = vmatprep.subr.mxu0 0.0
    %67 = vmatpush1.xpose.msra.mxu0 %v57
    %68 = vmatprep.subr.mxu0 0.0
    %69 = vmatpush1.xpose.msra.mxu0 0.0
    %70 = vmatprep.subr.mxu0 0.0
    %71 = vmatpush1.xpose.msra.mxu0 0.0
    %72 = vmatprep.subr.mxu0 0.0
    %73 = vmatpush1.xpose.msra.mxu0 0.0
    %74 = vmatprep.subr.mxu0 0.0
    %75 = vmatpush1.xpose.msra.mxu0 0.0
    %76 = vmatprep.subr.mxu0 0.0
    %77 = vmatpush1.xpose.msra.mxu0 0.0
    %78 = vmatprep.subr.mxu0 0.0
    %79 = vmatpush1.xpose.msra.mxu0 0.0
    %80 = vmatprep.subr.mxu0 0.0
    %81 = vmatpush1.xpose.msra.mxu0 0.0
    %82 = vmatprep.subr.mxu0 0.0
    %83 = vmatpush1.xpose.msra.mxu0 0.0
    %84 = vmatprep.subr.mxu0 0.0
    %85 = vmatpush1.xpose.msra.mxu0 0.0
    %86 = vmatprep.subr.mxu0 0.0
    %87 = vmatpush1.xpose.msra.mxu0 0.0
    %88 = vmatprep.subr.mxu0 0.0
    %89 = vmatpush1.xpose.msra.mxu0 0.0
    %90 = vmatprep.subr.mxu0 0.0
    %91 = vmatpush1.xpose.msra.mxu0 0.0
    %92 = vmatprep.subr.mxu0 0.0
    %93 = vmatpush1.xpose.msra.mxu0 0.0
    %94 = vmatprep.subr.mxu0 0.0
    %95 = vmatpush1.xpose.msra.mxu0 0.0
    %96 = vmatprep.subr.mxu0 0.0
    %97 = vmatpush1.xpose.msra.mxu0 0.0
    %98 = vmatprep.subr.mxu0 0.0
    %99 = vmatpush1.xpose.msra.mxu0 0.0
    %100 = vmatprep.subr.mxu0 0.0
    %101 = vmatpush1.xpose.msra.mxu0 0.0
    %102 = vmatprep.subr.mxu0 0.0
    %103 = vmatpush1.xpose.msra.mxu0 0.0
    %104 = vmatprep.subr.mxu0 0.0
    %105 = vmatpush1.xpose.msra.mxu0 0.0
    %106 = vmatprep.subr.mxu0 0.0
    %107 = vmatpush1.xpose.msra.mxu0 0.0
    %108 = vmatprep.subr.mxu0 0.0
    %109 = vmatpush1.xpose.msra.mxu0 0.0
    %110 = vmatprep.subr.mxu0 0.0
    %111 = vmatpush1.xpose.msra.mxu0 0.0
    %112 = vmatprep.subr.mxu0 0.0
    %113 = vmatpush1.xpose.msra.mxu0 0.0
    %114 = vmatprep.subr.mxu0 0.0
    %115 = vmatpush1.xpose.msra.mxu0 0.0
    %116 = vmatprep.subr.mxu0 0.0
    %117 = vmatpush1.xpose.msra.mxu0 0.0
    %118 = vmatprep.subr.mxu0 0.0
    %119 = vmatpush1.xpose.msra.mxu0 0.0
    %120 = vmatprep.subr.mxu0 0.0
    %121 = vmatpush1.xpose.msra.mxu0 0.0
    %122 = vmatprep.subr.mxu0 0.0
    %123 = vmatpush1.xpose.msra.mxu0 0.0
    %124 = vmatprep.subr.mxu0 0.0
    %125 = vmatpush1.xpose.msra.mxu0 0.0
    %126 = vmatprep.subr.mxu0 0.0
    %127 = vmatpush1.xpose.msra.mxu0 0.0
    %128 = vmatprep.mubr.f32.mxu0 0.0
    %129 = vmatmul.mubr.f32.gmra.mrb[0].mxu0 %v54
    %v130 = vpop.f32.mrb[0].mxu0
    %v131 = vadd.f32 0.0, %v130
    %v132 = vpop.f32.mrb[0].mxu0
    %133 = vmatprep.mubr.f32.mxu0 0.0
    %134 = vmatmul.mubr.f32.gmra.mrb[0].mxu0 %v55
    %v135 = vpop.f32.mrb[0].mxu0
    %v136 = vadd.f32 0.0, %v135
    %v137 = vpop.f32.mrb[0].mxu0
    %138 = vdwg.mxu0
    %v139 = vld [vmem:[#allocation2] sm:$0x1]
    %v141 = vlaneseq
    %v142 = vshrl.u32 %v141, 7
    %v143 = vsub.s32 0, %v142
    %v144 = vrot.slane %v139, %v143
    %v146 = vadd.f32 %v61, %v144
    %v147 = vadd.f32 %v63, %v144
    %v148 = vmul.f32 %v131, 2.0
    %v149 = vmul.f32 %v136, 2.0
    %v150 = vsub.f32 %v146, %v148
    %v151 = vsub.f32 %v147, %v149
    %v152 = vmax.f32 %v150, 0.0
    %v153 = vmax.f32 %v151, 0.0
    %vm154 = vcmask 130048
    %155 = vst.msk [vmem:[#allocation8] sm:$0xff] %vm154, %v152
    %156 = vst.msk [vmem:[#allocation8 + $0x8] sm:$0xff] %vm154, %v153
    // Predicated region
    $region26: #{tpu_custom_call.1} parent=1 // pred_check
      _
    $region27: #{tpu_custom_call.1} parent=1 // pred_check_branch
      %158 = sbr.rel (0) target = $region29
    $region28: #{tpu_custom_call.1} parent=1 // pred_region
      %s160 = ssub.s32 256, 256
      %161 = vsyncadd [#allocation4], %s160
      %s162 = sshll.u32 [#allocation8], 4
      %s163 = int_to_ptr.vmem [resolvable:$true] %s162
      %168 = dma.vmem_to_hbm [thread:$0]  %s163, 256, %s3, [#allocation4], 128, 128, 8
    $region29: #{tpu_custom_call.1} parent=1 // pred_fallthru
      _
    // Predicated region
    $region30: #{tpu_custom_call.1} parent=1 // pred_check
      _
    $region31: #{tpu_custom_call.1} parent=1 // pred_check_branch
      %170 = sbr.rel (0) target = $region33
    $region32: #{tpu_custom_call.1} parent=1 // pred_region
      %171 = dma.done [#allocation4], 256
    $region33: #{tpu_custom_call.1} parent=1 // pred_fallthru
      _
    %172 = vsyncpa [#allocation3], 1
    %173 = vsyncpa [#allocation6], 1
    %174 = vsyncpa [#allocation4], 1

</llo_original>
